<compile_context>
chip_gen: v6e
topology: v6e:2x2x1
jax: 0.10.0
libtpu: 0.0.40
codegen_flags: <defaults>
</compile_context>

<pallas_src>
import jax
import jax.numpy as jnp
from jax.experimental import pallas as pl
from jax.experimental.pallas import tpu as pltpu


# ---------------------------------------------------------------------------
# Kernel: local branch + sigmoid gate + rescale on one (C, TH) spatial tile.
# ---------------------------------------------------------------------------
def ms_cam_kernel(x_ref, bxg_ref, lw1_ref, lb1_ref, lw2_ref, out_ref):
    x_f32 = x_ref[0]                                   # (C, TH) f32 (no cast pass in XLA)
    x_bf = x_f32.astype(jnp.bfloat16)                  # cast in-kernel, feeds the MXU

    # Local branch (BN folded): 1x1 conv -> ReLU -> 1x1 conv, f32 accumulation.
    h = jnp.dot(lw1_ref[...], x_bf, preferred_element_type=jnp.float32)      # (Cr, TH)
    h = jnp.maximum(h + lb1_ref[...], 0.0)
    xl = jnp.dot(lw2_ref[...], h.astype(jnp.bfloat16),
                 preferred_element_type=jnp.float32)                         # (C, TH)

    # conv2 bias + per-image global-branch logits are pre-folded into bxg
    # ((C, 1), broadcast over lanes).  Exact sigmoid; exp runs on the EUP.
    z = xl + bxg_ref[0]
    wei = 1.0 / (1.0 + jnp.exp(-z))

    # Rescale in f32 (v5e has no bf16 VALU), store bf16 (halves HBM writes).
    out_ref[0] = (x_f32 * wei).astype(out_ref.dtype)


# ---------------------------------------------------------------------------
# Tile selection: lane-dense, VMEM-budget aware, megacore friendly.
# ---------------------------------------------------------------------------
def _pick_spatial_tile(hw_pad, n_batch, c, cr,
                       vmem_budget=24 * 1024 * 1024, max_tile=8192):
    """hw_pad is a multiple of 128.  Pick the largest multiple-of-128 divisor
    of hw_pad that fits the VMEM budget and keeps >=2 grid steps when N==1."""
    # bytes per lane column: 2x f32 input buffers + 2x bf16 output buffers
    # (double-buffered pipeline) + f32 intermediates (h, xl/wei) live in body.
    bytes_per_col = 2 * c * 4 + 2 * c * 2 + (cr + 2 * c) * 4
    cap = min(max_tile, hw_pad,
              max(128, (vmem_budget // bytes_per_col) // 128 * 128))
    candidates = [t for t in range(128, cap + 1, 128) if hw_pad % t == 0]
    best = max(candidates)                     # 128 always divides hw_pad
    if n_batch == 1 and hw_pad // best < 2:    # keep both v7x TCs busy
        halves = [t for t in candidates if hw_pad // t >= 2]
        if halves:
            best = max(halves)
    return best


def _global_branch(pooled_f32, gw1, gb1, gw2, gb2):
    """AdaptiveAvgPool2d(1) MLP (BN folded), computed in XLA.  pooled: (N, C)."""
    hg = jnp.maximum(pooled_f32 @ gw1.astype(jnp.float32).T + gb1[:, 0], 0.0)
    xg = hg @ gw2.astype(jnp.float32).T + gb2[:, 0]
    return xg                                                 # (N, C) f32


# ---------------------------------------------------------------------------
# Wrapper
# ---------------------------------------------------------------------------
@jax.jit
def ms_cam_pallas(x_nchw, params):
    """x_nchw: (N, C, H, W) float32.  Returns (N, C, H, W) bfloat16."""
    (lw1, lb1, lw2, lb2, gw1, gb1, gw2, gb2) = params
    N, C, H, W = x_nchw.shape
    HW = H * W
    Cr = lw1.shape[0]

    # NCHW consumed directly as (N, C, HW): free reshape, no transposes, no cast.
    x = x_nchw.reshape(N, C, HW)

    # Pad HW to a multiple of 128 only when needed -> lane-dense tiles/stores.
    HW_pad = ((HW + 127) // 128) * 128
    if HW_pad != HW:
        x = jnp.pad(x, ((0, 0), (0, 0), (0, HW_pad - HW)))

    # Global branch hoisted (needs the full-HW mean); fold its per-image logits
    # together with the local conv2 bias into a single (N, C, 1) additive term.
    pooled = jnp.mean(x_nchw, axis=(2, 3))                    # (N, C) f32
    xg = _global_branch(pooled, gw1, gb1, gw2, gb2)           # (N, C) f32
    bias_xg = (lb2.reshape(1, C, 1) + xg.reshape(N, C, 1)).astype(jnp.float32)

    TH = _pick_spatial_tile(HW_pad, N, C, Cr)
    grid = (N, HW_pad // TH)

    out = pl.pallas_call(
        ms_cam_kernel,
        out_shape=jax.ShapeDtypeStruct((N, C, HW_pad), jnp.bfloat16),
        grid_spec=pltpu.PrefetchScalarGridSpec(
            num_scalar_prefetch=0,
            grid=grid,
            in_specs=[
                pl.BlockSpec((1, C, TH), lambda b, t: (b, 0, t)),   # x tile (f32)
                pl.BlockSpec((1, C, 1),  lambda b, t: (b, 0, 0)),   # bias2 + global logits
                pl.BlockSpec((Cr, C),    lambda b, t: (0, 0)),      # local conv1 W (bf16)
                pl.BlockSpec((Cr, 1),    lambda b, t: (0, 0)),      # local conv1 b (f32)
                pl.BlockSpec((C, Cr),    lambda b, t: (0, 0)),      # local conv2 W (bf16)
            ],
            out_specs=pl.BlockSpec((1, C, TH), lambda b, t: (b, 0, t)),
        ),
        compiler_params=pltpu.CompilerParams(
            dimension_semantics=("parallel", "parallel"),
            vmem_limit_bytes=32 * 1024 * 1024,   # within scoped limit on all gens (incl. v7x)
        ),
    )(x, bias_xg, lw1, lb1, lw2)

    if HW_pad != HW:
        out = out[:, :, :HW]
    return out.reshape(N, C, H, W)


# ---------------------------------------------------------------------------
# Parameter construction (deterministic, synthetic) + BN folding
# ---------------------------------------------------------------------------
def _fold_bn(w, b, gamma, beta, mean, var, eps=1e-5):
    """Fold eval-mode BatchNorm into a preceding 1x1 conv.
    w: (C_out, C_in); b: (C_out,).  BN acts on the C_out axis."""
    scale = gamma / jnp.sqrt(var + eps)
    return w * scale[:, None], (b - mean) * scale + beta


def make_params(key, channels=64, r=4):
    inter = channels // r
    ks = jax.random.split(key, 12)

    def conv_w(k, cin, cout):
        return jax.random.normal(k, (cout, cin), jnp.float32) * (1.0 / jnp.sqrt(cin))

    def conv_b(k, cout):
        return jax.random.normal(k, (cout,), jnp.float32) * 0.1

    def bn(k, c):
        kg, kb, km, kv = jax.random.split(k, 4)
        g = 1.0 + 0.1 * jax.random.normal(kg, (c,), jnp.float32)
        beta = 0.1 * jax.random.normal(kb, (c,), jnp.float32)
        mean = 0.1 * jax.random.normal(km, (c,), jnp.float32)
        var = 1.0 + 0.1 * jax.random.uniform(kv, (c,), jnp.float32)
        return g, beta, mean, var

    # local branch
    lw1, lb1 = _fold_bn(conv_w(ks[0], channels, inter), conv_b(ks[1], inter),
                        *bn(ks[2], inter))
    lw2, lb2 = _fold_bn(conv_w(ks[3], inter, channels), conv_b(ks[4], channels),
                        *bn(ks[5], channels))
    # global branch
    gw1, gb1 = _fold_bn(conv_w(ks[6], channels, inter), conv_b(ks[7], inter),
                        *bn(ks[8], inter))
    gw2, gb2 = _fold_bn(conv_w(ks[9], inter, channels), conv_b(ks[10], channels),
                        *bn(ks[11], channels))

    to_w = lambda w: w.astype(jnp.bfloat16)                  # bf16 weights in HBM
    to_b = lambda b: b.reshape(-1, 1).astype(jnp.float32)    # (C_out, 1) f32 bias
    return (to_w(lw1), to_b(lb1), to_w(lw2), to_b(lb2),
            to_w(gw1), to_b(gb1), to_w(gw2), to_b(gb2))


# ---------------------------------------------------------------------------
# Pure-JAX reference of the same (BN-folded, bf16-matmul) forward pass.
# ---------------------------------------------------------------------------
def ms_cam_reference(x_nchw, params):
    (lw1, lb1, lw2, lb2, gw1, gb1, gw2, gb2) = params
    N, C, H, W = x_nchw.shape
    x = x_nchw.reshape(N, C, H * W)
    xb = x.astype(jnp.bfloat16)

    # local branch
    h = jnp.einsum('rc,ncs->nrs', lw1, xb, preferred_element_type=jnp.float32)
    h = jnp.maximum(h + lb1[None, :, :], 0.0)
    xl = jnp.einsum('cr,nrs->ncs', lw2, h.astype(jnp.bfloat16),
                    preferred_element_type=jnp.float32) + lb2[None, :, :]

    # global branch
    pooled = jnp.mean(x_nchw, axis=(2, 3))
    xg = _global_branch(pooled, gw1, gb1, gw2, gb2)          # (N, C)

    wei = jax.nn.sigmoid(xl + xg[:, :, None])
    out = (x * wei).astype(jnp.bfloat16)
    return out.reshape(N, C, H, W)


def _check(out, ref, name):
    assert out.shape == ref.shape, f"{name}: shape mismatch"
    assert out.dtype == jnp.bfloat16, f"{name}: dtype mismatch"
    o32 = out.astype(jnp.float32)
    r32 = ref.astype(jnp.float32)
    max_diff = float(jnp.max(jnp.abs(o32 - r32)))
    assert jnp.allclose(o32, r32, atol=3e-2, rtol=3e-2), (
        f"{name}: mismatch vs JAX reference (max |diff|={max_diff})")


if __name__ == "__main__":
    channels, r = 64, 4          # module defaults
    key = jax.random.PRNGKey(0)
    kx1, kx2, kp = jax.random.split(key, 3)
    params = make_params(kp, channels=channels, r=r)

    # Case 1: HW = 16x16 = 256 (already a multiple of 128), N=2.
    x1 = jax.random.normal(kx1, (2, channels, 16, 16), jnp.float32)
    out1 = jax.block_until_ready(ms_cam_pallas(x1, params))
    _check(out1, ms_cam_reference(x1, params), "case1")

    # Case 2: HW = 12x12 = 144 (no multiple-of-128 divisor) and N=1:
    # exercises the lane-padding path and the megacore grid split.
    x2 = jax.random.normal(kx2, (1, channels, 12, 12), jnp.float32)
    out2 = jax.block_until_ready(ms_cam_pallas(x2, params))
    _check(out2, ms_cam_reference(x2, params), "case2")

    print("KERNEL_OK")
</pallas_src>

<mosaic_0001>
module attributes {stable_mosaic.version = 11 : i64} {
  func.func @ms_cam_kernel(%arg0: i32, %arg1: i32, %arg2: memref<1x64x256xf32, #tpu.memory_space<vmem>>, %arg3: memref<1x64x1xf32, #tpu.memory_space<vmem>>, %arg4: memref<16x64xbf16, #tpu.memory_space<vmem>>, %arg5: memref<16x1xf32, #tpu.memory_space<vmem>>, %arg6: memref<64x16xbf16, #tpu.memory_space<vmem>>, %arg7: memref<1x64x256xbf16, #tpu.memory_space<vmem>>) attributes {dimension_semantics = [#tpu.dimension_semantics<parallel>, #tpu.dimension_semantics<parallel>], iteration_bounds = array<i64: 2, 1>, scalar_prefetch = 0 : i64, scratch_operands = 0 : i64, tpu.core_type = #tpu.core_type<tc>, window_params = [{transform_indices = @transform_0, window_bounds = array<i64: 1, 64, 256>}, {transform_indices = @transform_1, window_bounds = array<i64: 1, 64, 1>}, {pipeline_mode = #tpu.pipeline_mode<synchronous>, transform_indices = @transform_2, window_bounds = array<i64: 16, 64>}, {pipeline_mode = #tpu.pipeline_mode<synchronous>, transform_indices = @transform_3, window_bounds = array<i64: 16, 1>}, {pipeline_mode = #tpu.pipeline_mode<synchronous>, transform_indices = @transform_4, window_bounds = array<i64: 64, 16>}, {transform_indices = @transform_5, window_bounds = array<i64: 1, 64, 256>}]} {
    %c0 = arith.constant 0 : index
    %c0_0 = arith.constant 0 : index
    %c0_1 = arith.constant 0 : index
    %0 = vector.load %arg2[%c0, %c0_0, %c0_1] : memref<1x64x256xf32, #tpu.memory_space<vmem>>, vector<1x64x256xf32>
    %1 = vector.shape_cast %0 : vector<1x64x256xf32> to vector<64x256xf32>
    %2 = arith.truncf %1 : vector<64x256xf32> to vector<64x256xbf16>
    %c0_2 = arith.constant 0 : index
    %c0_3 = arith.constant 0 : index
    %3 = vector.load %arg4[%c0_2, %c0_3] : memref<16x64xbf16, #tpu.memory_space<vmem>>, vector<16x64xbf16>
    %cst = arith.constant dense<0.000000e+00> : vector<16x256xf32>
    %4 = tpu.matmul %3, %2, %cst {dimension_numbers = #tpu.dot_dimension_numbers<[1], [0], [0], [1], [0, 0, 1, 1], [], []>} : vector<16x64xbf16>, vector<64x256xbf16>, vector<16x256xf32> -> vector<16x256xf32>
    %c0_4 = arith.constant 0 : index
    %c0_5 = arith.constant 0 : index
    %5 = vector.load %arg5[%c0_4, %c0_5] : memref<16x1xf32, #tpu.memory_space<vmem>>, vector<16x1xf32>
    %6 = vector.broadcast %5 : vector<16x1xf32> to vector<16x256xf32>
    %7 = arith.addf %4, %6 : vector<16x256xf32>
    %cst_6 = arith.constant 0.000000e+00 : f32
    %8 = vector.broadcast %cst_6 : f32 to vector<16x256xf32>
    %9 = arith.maximumf %7, %8 : vector<16x256xf32>
    %c0_7 = arith.constant 0 : index
    %c0_8 = arith.constant 0 : index
    %10 = vector.load %arg6[%c0_7, %c0_8] : memref<64x16xbf16, #tpu.memory_space<vmem>>, vector<64x16xbf16>
    %11 = arith.truncf %9 : vector<16x256xf32> to vector<16x256xbf16>
    %cst_9 = arith.constant dense<0.000000e+00> : vector<64x256xf32>
    %12 = tpu.matmul %10, %11, %cst_9 {dimension_numbers = #tpu.dot_dimension_numbers<[1], [0], [0], [1], [0, 0, 1, 1], [], []>} : vector<64x16xbf16>, vector<16x256xbf16>, vector<64x256xf32> -> vector<64x256xf32>
    %c0_10 = arith.constant 0 : index
    %c0_11 = arith.constant 0 : index
    %c0_12 = arith.constant 0 : index
    %13 = vector.load %arg3[%c0_10, %c0_11, %c0_12] : memref<1x64x1xf32, #tpu.memory_space<vmem>>, vector<1x64x1xf32>
    %14 = vector.shape_cast %13 : vector<1x64x1xf32> to vector<64x1xf32>
    %15 = vector.broadcast %14 : vector<64x1xf32> to vector<64x256xf32>
    %16 = arith.addf %12, %15 : vector<64x256xf32>
    %cst_13 = arith.constant 0.000000e+00 : f32
    %17 = vector.broadcast %cst_13 : f32 to vector<64x256xf32>
    %18 = arith.subf %17, %16 : vector<64x256xf32>
    %19 = math.exp %18 : vector<64x256xf32>
    %cst_14 = arith.constant 1.000000e+00 : f32
    %20 = vector.broadcast %cst_14 : f32 to vector<64x256xf32>
    %21 = arith.addf %20, %19 : vector<64x256xf32>
    %cst_15 = arith.constant 1.000000e+00 : f32
    %22 = vector.broadcast %cst_15 : f32 to vector<64x256xf32>
    %23 = arith.divf %22, %21 : vector<64x256xf32>
    %24 = arith.mulf %1, %23 : vector<64x256xf32>
    %25 = arith.truncf %24 : vector<64x256xf32> to vector<64x256xbf16>
    %c0_16 = arith.constant 0 : index
    %c0_17 = arith.constant 0 : index
    %c0_18 = arith.constant 0 : index
    %26 = vector.load %arg7[%c0_16, %c0_17, %c0_18] : memref<1x64x256xbf16, #tpu.memory_space<vmem>>, vector<1x64x256xbf16>
    %27 = vector.shape_cast %26 : vector<1x64x256xbf16> to vector<64x256xbf16>
    %28 = vector.shape_cast %25 : vector<64x256xbf16> to vector<1x64x256xbf16>
    tpu.vector_store %arg7[%c0_16, %c0_17, %c0_18], %28 {strides = array<i32>} : memref<1x64x256xbf16, #tpu.memory_space<vmem>>, vector<1x64x256xbf16>,
    return
  }
  func.func @transform_0(%arg0: i32, %arg1: i32) -> (i32, i32, i32) {
    %c0_i32 = arith.constant 0 : i32
    %c0_i32_0 = arith.constant 0 : i32
    return %arg0, %c0_i32, %arg1 : i32, i32, i32
  }
  func.func @transform_1(%arg0: i32, %arg1: i32) -> (i32, i32, i32) {
    %c0_i32 = arith.constant 0 : i32
    %c0_i32_0 = arith.constant 0 : i32
    %c0_i32_1 = arith.constant 0 : i32
    return %arg0, %c0_i32, %c0_i32_0 : i32, i32, i32
  }
  func.func @transform_2(%arg0: i32, %arg1: i32) -> (i32, i32) {
    %c0_i32 = arith.constant 0 : i32
    %c0_i32_0 = arith.constant 0 : i32
    %c0_i32_1 = arith.constant 0 : i32
    return %c0_i32, %c0_i32_0 : i32, i32
  }
  func.func @transform_3(%arg0: i32, %arg1: i32) -> (i32, i32) {
    %c0_i32 = arith.constant 0 : i32
    %c0_i32_0 = arith.constant 0 : i32
    %c0_i32_1 = arith.constant 0 : i32
    return %c0_i32, %c0_i32_0 : i32, i32
  }
  func.func @transform_4(%arg0: i32, %arg1: i32) -> (i32, i32) {
    %c0_i32 = arith.constant 0 : i32
    %c0_i32_0 = arith.constant 0 : i32
    %c0_i32_1 = arith.constant 0 : i32
    return %c0_i32, %c0_i32_0 : i32, i32
  }
  func.func @transform_5(%arg0: i32, %arg1: i32) -> (i32, i32, i32) {
    %c0_i32 = arith.constant 0 : i32
    %c0_i32_0 = arith.constant 0 : i32
    return %arg0, %c0_i32, %arg1 : i32, i32, i32
  }
}

</mosaic_0001>

<llo_original>
// kernel: ms_cam_pallas.1
$region0: #{ms_cam_pallas.1}
  #allocation0 [shape = 'u32[]', space=smem, size = 0x4, offset = 0x4, fixed_abs, tag = 'smem constant byte address 0x4 - core index']
  #allocation1 [shape = 'u32[144,128]{1,0:T(1,128)}', space=vmem, size = 0x12000, scoped, tag = 'internal scratch']
  %s0 = inlined_call_operand.vmem [shape: f32[2,64,256], index: 0, kind: input, shape index: {}]
  %s1 = inlined_call_operand.vmem [shape: f32[2,64,1], index: 1, kind: input, shape index: {}]
  %s2 = inlined_call_operand.vmem [shape: bf16[16,64], index: 2, kind: input, shape index: {}]
  %s3 = inlined_call_operand.vmem [shape: f32[16,1], index: 3, kind: input, shape index: {}]
  %s4 = inlined_call_operand.vmem [shape: bf16[64,16], index: 4, kind: input, shape index: {}]
  %s5 = inlined_call_operand.vmem [shape: bf16[2,64,256], index: 5, kind: output, shape index: {}]
  %s6 = sld [smem:[#allocation0]]
  $region53: #{ms_cam_pallas.1} parent=0
    _
  %s8 = ssub.s32 1, %s6
  %s9 = scalar_select 0, %s8, %s6
  loop: start=0, step=1, limit=4
  $region2: #{ms_cam_pallas.1} parent=0 // loop_pre_header
    _
  $region3: #{ms_cam_pallas.1} parent=0 // loop_header
    %s11 = sphi 0, %s15
    %p12 = scmp.ge.s32.totalorder %s11, 4
    %s18 = sphi 0, %s30
    %s19 = sphi 0, %s26
    %s20 = sphi 0, %s18
    %s21 = sphi 0, %s19
    %s22 = sphi 0, %s20
    %s23 = sphi 0, %s21
    %s35 = sphi 0, %s37
    %s38 = sphi 0, %s35
    %s39 = sphi 0, %s38
    %s55 = sphi 0, %s39
    %s61 = sphi 0, %s63
    %s64 = sphi 0, %s61
    %s65 = sphi 0, %s64
    %s81 = sphi 0, %s65
    %s85 = sphi 0, %s85
    %s87 = sphi 0, %s85
    %s88 = sphi 0, %s87
    %s102 = sphi 0, %s88
    %s106 = sphi 0, %s106
    %s108 = sphi 0, %s106
    %s109 = sphi 0, %s108
    %s123 = sphi 0, %s109
    %s127 = sphi 0, %s127
    %s129 = sphi 0, %s127
    %s130 = sphi 0, %s129
    %s144 = sphi 0, %s130
    %s152 = sphi 0, %s154
    %s155 = sphi 0, %s152
    %s156 = sphi 0, %s155
    %s172 = sphi 0, %s156
  $region4: #{ms_cam_pallas.1} parent=0 // loop_header_branch
    %14 = sbr.rel (%p12) target = $region8
  $region5: #{ms_cam_pallas.1} parent=0 // loop_body
    %s16 = ssub.s32 %s11, 1
    %s17 = ssub.s32 %s11, 2
    %s24 = sadd.s32 1, %s19
    %p25 = scmp.ge.s32.totalorder %s24, 1
    %s26 = scalar_select %p25, 0, %s24
    %s27 = sadd.s32 1, %s18
    %s28 = scalar_select %p25, %s27, %s18
    %p29 = scmp.ge.s32.totalorder %s28, 2
    %s30 = scalar_select %p29, 0, %s28
    %s31 = ssub.s32 %s18, %s30
    %s32 = ssub.s32 %s19, %s26
    %s33 = sor.u32 %s31, %s32
    %p34 = scmp.eq.s32.totalorder %s33, 0
    %s36 = sadd.s32 %s35, 1
    %s37 = scalar_select %p34, %s35, %s36
    %p40 = pneg %p34
    %p41 = scmp.eq.s32.totalorder %s11, 1
    %p42 = por %p40, %p41
    %p43 = scmp.ne.s32.totalorder %s35, %s38
    %p44 = scmp.eq.s32.totalorder %s11, 0
    %p45 = por %p43, %p44
    %p46 = scmp.ne.s32.totalorder %s35, %s38
    %p47 = scmp.eq.s32.totalorder %s16, 1
    %p48 = por %p46, %p47
    %p49 = scmp.ne.s32.totalorder %s38, %s39
    %p50 = scmp.eq.s32.totalorder %s16, 0
    %p51 = por %p49, %p50
    %p52 = scmp.ne.s32.totalorder %s38, %s39
    %p53 = scmp.eq.s32.totalorder %s17, 1
    %p54 = por %p52, %p53
    %p56 = scmp.ne.s32.totalorder %s39, %s55
    %p57 = scmp.eq.s32.totalorder %s17, 0
    %p58 = por %p56, %p57
    %s59 = ssub.s32 %s18, %s30
    %p60 = scmp.eq.s32.totalorder %s59, 0
    %s62 = sadd.s32 %s61, 1
    %s63 = scalar_select %p60, %s61, %s62
    %p66 = pneg %p60
    %p67 = scmp.eq.s32.totalorder %s11, 1
    %p68 = por %p66, %p67
    %p69 = scmp.ne.s32.totalorder %s61, %s64
    %p70 = scmp.eq.s32.totalorder %s11, 0
    %p71 = por %p69, %p70
    %p72 = scmp.ne.s32.totalorder %s61, %s64
    %p73 = scmp.eq.s32.totalorder %s16, 1
    %p74 = por %p72, %p73
    %p75 = scmp.ne.s32.totalorder %s64, %s65
    %p76 = scmp.eq.s32.totalorder %s16, 0
    %p77 = por %p75, %p76
    %p78 = scmp.ne.s32.totalorder %s64, %s65
    %p79 = scmp.eq.s32.totalorder %s17, 1
    %p80 = por %p78, %p79
    %p82 = scmp.ne.s32.totalorder %s65, %s81
    %p83 = scmp.eq.s32.totalorder %s17, 0
    %p84 = por %p82, %p83
    %s86 = sadd.s32 %s85, 1
    %p89 = scmp.eq.s32.totalorder %s11, 1
    %p90 = scmp.ne.s32.totalorder %s85, %s87
    %p91 = scmp.eq.s32.totalorder %s11, 0
    %p92 = por %p90, %p91
    %p93 = scmp.ne.s32.totalorder %s85, %s87
    %p94 = scmp.eq.s32.totalorder %s16, 1
    %p95 = por %p93, %p94
    %p96 = scmp.ne.s32.totalorder %s87, %s88
    %p97 = scmp.eq.s32.totalorder %s16, 0
    %p98 = por %p96, %p97
    %p99 = scmp.ne.s32.totalorder %s87, %s88
    %p100 = scmp.eq.s32.totalorder %s17, 1
    %p101 = por %p99, %p100
    %p103 = scmp.ne.s32.totalorder %s88, %s102
    %p104 = scmp.eq.s32.totalorder %s17, 0
    %p105 = por %p103, %p104
    %s107 = sadd.s32 %s106, 1
    %p110 = scmp.eq.s32.totalorder %s11, 1
    %p111 = scmp.ne.s32.totalorder %s106, %s108
    %p112 = scmp.eq.s32.totalorder %s11, 0
    %p113 = por %p111, %p112
    %p114 = scmp.ne.s32.totalorder %s106, %s108
    %p115 = scmp.eq.s32.totalorder %s16, 1
    %p116 = por %p114, %p115
    %p117 = scmp.ne.s32.totalorder %s108, %s109
    %p118 = scmp.eq.s32.totalorder %s16, 0
    %p119 = por %p117, %p118
    %p120 = scmp.ne.s32.totalorder %s108, %s109
    %p121 = scmp.eq.s32.totalorder %s17, 1
    %p122 = por %p120, %p121
    %p124 = scmp.ne.s32.totalorder %s109, %s123
    %p125 = scmp.eq.s32.totalorder %s17, 0
    %p126 = por %p124, %p125
    %s128 = sadd.s32 %s127, 1
    %p131 = scmp.eq.s32.totalorder %s11, 1
    %p132 = scmp.ne.s32.totalorder %s127, %s129
    %p133 = scmp.eq.s32.totalorder %s11, 0
    %p134 = por %p132, %p133
    %p135 = scmp.ne.s32.totalorder %s127, %s129
    %p136 = scmp.eq.s32.totalorder %s16, 1
    %p137 = por %p135, %p136
    %p138 = scmp.ne.s32.totalorder %s129, %s130
    %p139 = scmp.eq.s32.totalorder %s16, 0
    %p140 = por %p138, %p139
    %p141 = scmp.ne.s32.totalorder %s129, %s130
    %p142 = scmp.eq.s32.totalorder %s17, 1
    %p143 = por %p141, %p142
    %p145 = scmp.ne.s32.totalorder %s130, %s144
    %p146 = scmp.eq.s32.totalorder %s17, 0
    %p147 = por %p145, %p146
    %s148 = ssub.s32 %s18, %s30
    %s149 = ssub.s32 %s19, %s26
    %s150 = sor.u32 %s148, %s149
    %p151 = scmp.eq.s32.totalorder %s150, 0
    %s153 = sadd.s32 %s152, 1
    %s154 = scalar_select %p151, %s152, %s153
    %p157 = pneg %p151
    %p158 = scmp.eq.s32.totalorder %s11, 1
    %p159 = por %p157, %p158
    %p160 = scmp.ne.s32.totalorder %s152, %s155
    %p161 = scmp.eq.s32.totalorder %s11, 0
    %p162 = por %p160, %p161
    %p163 = scmp.ne.s32.totalorder %s152, %s155
    %p164 = scmp.eq.s32.totalorder %s16, 1
    %p165 = por %p163, %p164
    %p166 = scmp.ne.s32.totalorder %s155, %s156
    %p167 = scmp.eq.s32.totalorder %s16, 0
    %p168 = por %p166, %p167
    %p169 = scmp.ne.s32.totalorder %s155, %s156
    %p170 = scmp.eq.s32.totalorder %s17, 1
    %p171 = por %p169, %p170
    %p173 = scmp.ne.s32.totalorder %s156, %s172
    %p174 = scmp.eq.s32.totalorder %s17, 0
    %p175 = por %p173, %p174
    %p176 = scmp.le.s32.totalorder 1, %s11
    %p177 = scmp.lt.s32.totalorder %s11, 3
    %p178 = pnand %p176, %p177
    %p179 = pneg %p178
    // Predicated region
    $region9: #{ms_cam_pallas.1} parent=5 // pred_check
      _
    $region10: #{ms_cam_pallas.1} parent=5 // pred_check_branch
      %181 = sbr.rel (%p178) target = $region12
    $region11: #{ms_cam_pallas.1} parent=5 // pred_region
      %s182 = ssub.s32 %s11, 1
      // Predicated region
      $region13: #{ms_cam_pallas.1} parent=11 // pred_check
        %p183 = pneg %p98
      $region14: #{ms_cam_pallas.1} parent=11 // pred_check_branch
        %185 = sbr.rel (%p183) target = $region16
      $region15: #{ms_cam_pallas.1} parent=11 // pred_region
        _
      $region16: #{ms_cam_pallas.1} parent=11 // pred_fallthru
        _
      // Predicated region
      $region17: #{ms_cam_pallas.1} parent=11 // pred_check
        %p186 = pneg %p119
      $region18: #{ms_cam_pallas.1} parent=11 // pred_check_branch
        %188 = sbr.rel (%p186) target = $region20
      $region19: #{ms_cam_pallas.1} parent=11 // pred_region
        _
      $region20: #{ms_cam_pallas.1} parent=11 // pred_fallthru
        _
      // Predicated region
      $region21: #{ms_cam_pallas.1} parent=11 // pred_check
        %p189 = pneg %p140
      $region22: #{ms_cam_pallas.1} parent=11 // pred_check_branch
        %191 = sbr.rel (%p189) target = $region24
      $region23: #{ms_cam_pallas.1} parent=11 // pred_region
        _
      $region24: #{ms_cam_pallas.1} parent=11 // pred_fallthru
        _
    $region12: #{ms_cam_pallas.1} parent=5 // pred_fallthru
      _
    %p192 = scmp.lt.s32.totalorder %s11, 2
    // Predicated region
    $region25: #{ms_cam_pallas.1} parent=5 // pred_check
      %p193 = pneg %p192
    $region26: #{ms_cam_pallas.1} parent=5 // pred_check_branch
      %195 = sbr.rel (%p193) target = $region28
    $region27: #{ms_cam_pallas.1} parent=5 // pred_region
      // Predicated region
      $region29: #{ms_cam_pallas.1} parent=27 // pred_check
        %p196 = pneg %p45
      $region30: #{ms_cam_pallas.1} parent=27 // pred_check_branch
        %198 = sbr.rel (%p196) target = $region32
      $region31: #{ms_cam_pallas.1} parent=27 // pred_region
        %s199 = smul.u32 2, %s19
        %p200 = scmp.lt.s32.totalorder %s18, 1
        %s201 = scalar_select %p200, %s18, 1
        %p202 = scmp.lt.s32.totalorder %s199, 1
        %s203 = scalar_select %p202, %s199, 1
        %s204 = smul.addr %s201, 16
        %s205 = sadd.s32 %s203, %s204
        %s206 = smul.addr %s205, 8
        %s207 = scalar_lea.vmem %s0, %s206
        %s208 = smul.u32 2, %s19
      $region32: #{ms_cam_pallas.1} parent=27 // pred_fallthru
        _
      // Predicated region
      $region33: #{ms_cam_pallas.1} parent=27 // pred_check
        %p209 = pneg %p71
      $region34: #{ms_cam_pallas.1} parent=27 // pred_check_branch
        %211 = sbr.rel (%p209) target = $region36
      $region35: #{ms_cam_pallas.1} parent=27 // pred_region
        %p212 = scmp.lt.s32.totalorder %s18, 1
        %s213 = scalar_select %p212, %s18, 1
        %s214 = smul.addr %s213, 8
        %s215 = smul.addr %s214, 8
        %s216 = scalar_lea.vmem %s1, %s215
      $region36: #{ms_cam_pallas.1} parent=27 // pred_fallthru
        _
    $region28: #{ms_cam_pallas.1} parent=5 // pred_fallthru
      _
    %p217 = scmp.le.s32.totalorder 1, %s11
    %p218 = scmp.lt.s32.totalorder %s11, 3
    %p219 = pnand %p217, %p218
    %p220 = pneg %p219
    // Predicated region
    $region37: #{ms_cam_pallas.1} parent=5 // pred_check
      _
    $region38: #{ms_cam_pallas.1} parent=5 // pred_check_branch
      %222 = sbr.rel (%p219) target = $region40
    $region39: #{ms_cam_pallas.1} parent=5 // pred_region
      %s223 = ssub.s32 %s11, 1
      %s224 = smul.u32 2, %s21
      %p225 = scmp.lt.s32.totalorder %s20, 1
      %s226 = scalar_select %p225, %s20, 1
      %p227 = scmp.lt.s32.totalorder %s224, 1
      %s228 = scalar_select %p227, %s224, 1
      %s229 = smul.addr %s226, 16
      %s230 = sadd.s32 %s228, %s229
      %s231 = smul.addr %s230, 8
      %s232 = scalar_lea.vmem %s0, %s231
      %p233 = pneg %p51
      %p234 = pneg %p48
      %p235 = scmp.lt.s32.totalorder %s20, 1
      %s236 = scalar_select %p235, %s20, 1
      %s237 = smul.addr %s236, 8
      %s238 = smul.addr %s237, 8
      %s239 = scalar_lea.vmem %s1, %s238
      %p240 = pneg %p77
      %p241 = pneg %p74
      %p242 = pneg %p98
      %p243 = pneg %p95
      %p244 = pneg %p119
      %p245 = pneg %p116
      %p246 = pneg %p140
      %p247 = pneg %p137
      %p248 = pneg %p168
      %p249 = pneg %p165
      %s250 = smul.u32 2, %s21
      %p251 = scmp.lt.s32.totalorder %s20, 1
      %s252 = scalar_select %p251, %s20, 1
      %p253 = scmp.lt.s32.totalorder %s250, 1
      %s254 = scalar_select %p253, %s250, 1
      %s255 = smul.addr %s252, 16
      %s256 = sadd.s32 %s254, %s255
      %s257 = smul.addr %s256, 4
      %s258 = scalar_lea.vmem %s5, %s257
      %s259 = smul.u32 2, %s21
      %p260 = scmp.lt.s32.totalorder %s20, 1
      %s261 = scalar_select %p260, %s20, 1
      %p262 = scmp.lt.s32.totalorder %s259, 1
      %s263 = scalar_select %p262, %s259, 1
      %s264 = smul.addr %s261, 16
      %s265 = sadd.s32 %s263, %s264
      %s266 = smul.addr %s265, 8
      %s267 = scalar_lea.vmem %s0, %s266
      %s268 = smul.u32 2, %s21
      %p269 = scmp.lt.s32.totalorder %s20, 1
      %s270 = scalar_select %p269, %s20, 1
      %s271 = smul.addr %s270, 8
      %s272 = smul.addr %s271, 8
      %s273 = scalar_lea.vmem %s1, %s272
      %s274 = smul.u32 2, %s21
      %p275 = scmp.lt.s32.totalorder %s20, 1
      %s276 = scalar_select %p275, %s20, 1
      %p277 = scmp.lt.s32.totalorder %s274, 1
      %s278 = scalar_select %p277, %s274, 1
      %s279 = smul.addr %s276, 16
      %s280 = sadd.s32 %s278, %s279
      %s281 = smul.addr %s280, 4
      %s282 = scalar_lea.vmem %s5, %s281
      %s283 = smul.u32 2, %s21
      %v285 = vld [vmem:[%s267] sm:$0xff]
      %v286 = vld [vmem:[%s267 + $0x8] sm:$0xff]
      %v287 = vld [vmem:[%s267 + $0x10] sm:$0xff]
      %v288 = vld [vmem:[%s267 + $0x18] sm:$0xff]
      %v289 = vld [vmem:[%s267 + $0x20] sm:$0xff]
      %v290 = vld [vmem:[%s267 + $0x28] sm:$0xff]
      %v291 = vld [vmem:[%s267 + $0x30] sm:$0xff]
      %v292 = vld [vmem:[%s267 + $0x38] sm:$0xff]
      %v293 = vld [vmem:[%s267 + $0x40] sm:$0xff]
      %v294 = vld [vmem:[%s267 + $0x48] sm:$0xff]
      %v295 = vld [vmem:[%s267 + $0x50] sm:$0xff]
      %v296 = vld [vmem:[%s267 + $0x58] sm:$0xff]
      %v297 = vld [vmem:[%s267 + $0x60] sm:$0xff]
      %v298 = vld [vmem:[%s267 + $0x68] sm:$0xff]
      %v299 = vld [vmem:[%s267 + $0x70] sm:$0xff]
      %v300 = vld [vmem:[%s267 + $0x78] sm:$0xff]
      %v301 = vpack.c.bf16 %v287, %v285
      %v302 = vpack.c.bf16 %v288, %v286
      %v303 = vpack.c.bf16 %v291, %v289
      %v304 = vpack.c.bf16 %v292, %v290
      %v305 = vpack.c.bf16 %v295, %v293
      %v306 = vpack.c.bf16 %v296, %v294
      %v307 = vpack.c.bf16 %v299, %v297
      %v308 = vpack.c.bf16 %v300, %v298
      %v309 = vld [vmem:[%s2] sm:$0xf]
      %v310 = vld [vmem:[%s2 + $0x4] sm:$0xf]
      %v311 = vld [vmem:[%s3] sm:$0xff]
      %v312 = vld [vmem:[%s3 + $0x8] sm:$0xff]
      %314 = vset.pattern.permute.xlu0 0
      %315 = vperm.xlu0 %314, %v311
      %v316 = vpop.permute.xlu0 %315
      %319 = vset.pattern.permute.xlu0 0
      %320 = vperm.xlu0 %319, %v312
      %v321 = vpop.permute.xlu0 %320
      %v325 = vunpack.c.l.b16 %v309
      %v326 = vunpack.c.l.b16 %v310
      %v327 = vpack.c.b16 %v326, %v325
      %vm328 = vcmask 523264
      %v330 = vsel %vm328, %v327, 0
      %332 = vmatprep.subr.bf16.mxu0 0
      %333 = vmatpush1.bf16.msra.mxu0 0
      %334 = vmatprep.subr.bf16.mxu0 0
      %335 = vmatpush1.bf16.msra.mxu0 0
      %336 = vmatprep.subr.bf16.mxu0 0
      %337 = vmatpush1.bf16.msra.mxu0 0
      %338 = vmatprep.subr.bf16.mxu0 0
      %339 = vmatpush1.bf16.msra.mxu0 0
      %340 = vmatprep.subr.bf16.mxu0 %v308
      %341 = vmatpush1.bf16.msra.mxu0 %v307
      %342 = vmatprep.subr.bf16.mxu0 %v306
      %343 = vmatpush1.bf16.msra.mxu0 %v305
      %344 = vmatprep.subr.bf16.mxu0 %v304
      %345 = vmatpush1.bf16.msra.mxu0 %v303
      %346 = vmatprep.subr.bf16.mxu0 %v302
      %347 = vmatpush1.bf16.msra.mxu0 %v301
      %348 = vmatprep.subr.bf16.mxu0 0
      %349 = vmatpush2.bf16.msra.mxu0 0
      %350 = vmatprep.subr.bf16.mxu0 0
      %351 = vmatpush2.bf16.msra.mxu0 0
      %352 = vmatprep.subr.bf16.mxu0 0
      %353 = vmatpush2.bf16.msra.mxu0 0
      %354 = vmatprep.subr.bf16.mxu0 0
      %355 = vmatpush2.bf16.msra.mxu0 0
      %356 = vmatprep.subr.bf16.mxu0 0
      %357 = vmatpush2.bf16.msra.mxu0 0
      %358 = vmatprep.subr.bf16.mxu0 0
      %359 = vmatpush2.bf16.msra.mxu0 0
      %360 = vmatprep.subr.bf16.mxu0 0
      %361 = vmatpush2.bf16.msra.mxu0 0
      %362 = vmatprep.subr.bf16.mxu0 0
      %363 = vmatpush2.bf16.msra.mxu0 0
      %364 = vmatprep.mubr.bf16.mxu0 0
      %365 = vmatmul.mubr.bf16.gmra.mxu0 %v330
      %v366 = vpop.f32.mrf.mxu0
      %v367 = vadd.f32 %v316, %v366
      %v368 = vpop.f32.mrf.mxu0
      %v369 = vadd.f32 %v316, %v368
      %v370 = vpop.f32.mrf.mxu0
      %v371 = vadd.f32 %v321, %v370
      %v372 = vpop.f32.mrf.mxu0
      %v373 = vadd.f32 %v321, %v372
      %374 = vdwg.mxu0
      %v375 = vmax.f32 %v367, 0.0
      %v376 = vmax.f32 %v369, 0.0
      %v377 = vmax.f32 %v371, 0.0
      %v378 = vmax.f32 %v373, 0.0
      %v379 = vld [vmem:[%s4] sm:$0xf]
      %v380 = vld [vmem:[%s4 + $0x4] sm:$0xf]
      %v381 = vld [vmem:[%s4 + $0x8] sm:$0xf]
      %v382 = vld [vmem:[%s4 + $0xc] sm:$0xf]
      %v383 = vld [vmem:[%s4 + $0x10] sm:$0xf]
      %v384 = vld [vmem:[%s4 + $0x14] sm:$0xf]
      %v385 = vld [vmem:[%s4 + $0x18] sm:$0xf]
      %v386 = vld [vmem:[%s4 + $0x1c] sm:$0xf]
      %v387 = vpack.c.bf16 %v377, %v375
      %v388 = vpack.c.bf16 %v378, %v376
      %v389 = vld [vmem:[%s273] sm:$0xff]
      %v390 = vld [vmem:[%s273 + $0x8] sm:$0xff]
      %v391 = vld [vmem:[%s273 + $0x10] sm:$0xff]
      %v392 = vld [vmem:[%s273 + $0x18] sm:$0xff]
      %v393 = vld [vmem:[%s273 + $0x20] sm:$0xff]
      %v394 = vld [vmem:[%s273 + $0x28] sm:$0xff]
      %v395 = vld [vmem:[%s273 + $0x30] sm:$0xff]
      %v396 = vld [vmem:[%s273 + $0x38] sm:$0xff]
      %398 = vset.pattern.permute.xlu0 0
      %399 = vperm.xlu0 %398, %v389
      %v400 = vpop.permute.xlu0 %399
      %403 = vset.pattern.permute.xlu0 0
      %404 = vperm.xlu0 %403, %v390
      %v405 = vpop.permute.xlu0 %404
      %408 = vset.pattern.permute.xlu0 0
      %409 = vperm.xlu0 %408, %v391
      %v410 = vpop.permute.xlu0 %409
      %413 = vset.pattern.permute.xlu0 0
      %414 = vperm.xlu0 %413, %v392
      %v415 = vpop.permute.xlu0 %414
      %418 = vset.pattern.permute.xlu0 0
      %419 = vperm.xlu0 %418, %v393
      %v420 = vpop.permute.xlu0 %419
      %423 = vset.pattern.permute.xlu0 0
      %424 = vperm.xlu0 %423, %v394
      %v425 = vpop.permute.xlu0 %424
      %428 = vset.pattern.permute.xlu0 0
      %429 = vperm.xlu0 %428, %v395
      %v430 = vpop.permute.xlu0 %429
      %433 = vset.pattern.permute.xlu0 0
      %434 = vperm.xlu0 %433, %v396
      %v435 = vpop.permute.xlu0 %434
      %v445 = vunpack.c.l.b16 %v379
      %v446 = vunpack.c.l.b16 %v380
      %v447 = vunpack.c.l.b16 %v381
      %v448 = vunpack.c.l.b16 %v382
      %v449 = vunpack.c.l.b16 %v383
      %v450 = vunpack.c.l.b16 %v384
      %v451 = vunpack.c.l.b16 %v385
      %v452 = vunpack.c.l.b16 %v386
      %v453 = vpack.c.b16 %v446, %v445
      %v454 = vpack.c.b16 %v448, %v447
      %v455 = vpack.c.b16 %v450, %v449
      %v456 = vpack.c.b16 %v452, %v451
      %vm457 = vcmask 130048
      %v459 = vsel %vm457, %v453, 0
      %v462 = vsel %vm457, %v454, 0
      %v465 = vsel %vm457, %v455, 0
      %v468 = vsel %vm457, %v456, 0
      %470 = vmatprep.subr.bf16.mxu0 0
      %471 = vmatpush1.bf16.msra.mxu0 0
      %472 = vmatprep.subr.bf16.mxu0 0
      %473 = vmatpush1.bf16.msra.mxu0 0
      %474 = vmatprep.subr.bf16.mxu0 0
      %475 = vmatpush1.bf16.msra.mxu0 0
      %476 = vmatprep.subr.bf16.mxu0 0
      %477 = vmatpush1.bf16.msra.mxu0 0
      %478 = vmatprep.subr.bf16.mxu0 0
      %479 = vmatpush1.bf16.msra.mxu0 0
      %480 = vmatprep.subr.bf16.mxu0 0
      %481 = vmatpush1.bf16.msra.mxu0 0
      %482 = vmatprep.subr.bf16.mxu0 0
      %483 = vmatpush1.bf16.msra.mxu0 0
      %484 = vmatprep.subr.bf16.mxu0 %v388
      %485 = vmatpush1.bf16.msra.mxu0 %v387
      %486 = vmatprep.subr.bf16.mxu0 0
      %487 = vmatpush2.bf16.msra.mxu0 0
      %488 = vmatprep.subr.bf16.mxu0 0
      %489 = vmatpush2.bf16.msra.mxu0 0
      %490 = vmatprep.subr.bf16.mxu0 0
      %491 = vmatpush2.bf16.msra.mxu0 0
      %492 = vmatprep.subr.bf16.mxu0 0
      %493 = vmatpush2.bf16.msra.mxu0 0
      %494 = vmatprep.subr.bf16.mxu0 0
      %495 = vmatpush2.bf16.msra.mxu0 0
      %496 = vmatprep.subr.bf16.mxu0 0
      %497 = vmatpush2.bf16.msra.mxu0 0
      %498 = vmatprep.subr.bf16.mxu0 0
      %499 = vmatpush2.bf16.msra.mxu0 0
      %500 = vmatprep.subr.bf16.mxu0 0
      %501 = vmatpush2.bf16.msra.mxu0 0
      %502 = vmatprep.mubr.bf16.mxu0 0
      %503 = vmatmul.mubr.bf16.gmra.mxu0 %v459
      %v504 = vpop.f32.mrf.mxu0
      %v505 = vadd.f32 %v400, %v504
      %v506 = vpop.f32.mrf.mxu0
      %v507 = vadd.f32 %v400, %v506
      %v508 = vpop.f32.mrf.mxu0
      %v509 = vadd.f32 %v405, %v508
      %v510 = vpop.f32.mrf.mxu0
      %v511 = vadd.f32 %v405, %v510
      %512 = vmatprep.mubr.bf16.mxu0 0
      %513 = vmatmul.mubr.bf16.gmra.mxu0 %v462
      %v514 = vpop.f32.mrf.mxu0
      %v515 = vadd.f32 %v410, %v514
      %v516 = vpop.f32.mrf.mxu0
      %v517 = vadd.f32 %v410, %v516
      %v518 = vpop.f32.mrf.mxu0
      %v519 = vadd.f32 %v415, %v518
      %v520 = vpop.f32.mrf.mxu0
      %v521 = vadd.f32 %v415, %v520
      %522 = vmatprep.mubr.bf16.mxu0 0
      %523 = vmatmul.mubr.bf16.gmra.mxu0 %v465
      %v524 = vpop.f32.mrf.mxu0
      %v525 = vadd.f32 %v420, %v524
      %v526 = vpop.f32.mrf.mxu0
      %v527 = vadd.f32 %v420, %v526
      %v528 = vpop.f32.mrf.mxu0
      %v529 = vadd.f32 %v425, %v528
      %v530 = vpop.f32.mrf.mxu0
      %v531 = vadd.f32 %v425, %v530
      %532 = vmatprep.mubr.bf16.mxu0 0
      %533 = vmatmul.mubr.bf16.gmra.mxu0 %v468
      %v534 = vpop.f32.mrf.mxu0
      %v535 = vadd.f32 %v430, %v534
      %v536 = vpop.f32.mrf.mxu0
      %v537 = vadd.f32 %v430, %v536
      %v538 = vpop.f32.mrf.mxu0
      %v539 = vadd.f32 %v435, %v538
      %v540 = vpop.f32.mrf.mxu0
      %v541 = vadd.f32 %v435, %v540
      %542 = vdwg.mxu0
      %v543 = vsub.f32 0.0, %v505
      %v544 = vsub.f32 0.0, %v507
      %v545 = vsub.f32 0.0, %v509
      %v546 = vsub.f32 0.0, %v511
      %v547 = vsub.f32 0.0, %v515
      %v548 = vsub.f32 0.0, %v517
      %v549 = vsub.f32 0.0, %v519
      %v550 = vsub.f32 0.0, %v521
      %v551 = vsub.f32 0.0, %v525
      %v552 = vsub.f32 0.0, %v527
      %v553 = vsub.f32 0.0, %v529
      %v554 = vsub.f32 0.0, %v531
      %v555 = vsub.f32 0.0, %v535
      %v556 = vsub.f32 0.0, %v537
      %v557 = vsub.f32 0.0, %v539
      %v558 = vsub.f32 0.0, %v541
      %v559 = vmul.f32 %v543, 1.442695
      %v560 = vpow.pop %v559
      %v561 = vmul.f32 %v544, 1.442695
      %v562 = vpow.pop %v561
      %v563 = vmul.f32 %v545, 1.442695
      %v564 = vpow.pop %v563
      %v565 = vmul.f32 %v546, 1.442695
      %v566 = vpow.pop %v565
      %v567 = vmul.f32 %v547, 1.442695
      %v568 = vpow.pop %v567
      %v569 = vmul.f32 %v548, 1.442695
      %v570 = vpow.pop %v569
      %v571 = vmul.f32 %v549, 1.442695
      %v572 = vpow.pop %v571
      %v573 = vmul.f32 %v550, 1.442695
      %v574 = vpow.pop %v573
      %v575 = vmul.f32 %v551, 1.442695
      %v576 = vpow.pop %v575
      %v577 = vmul.f32 %v552, 1.442695
      %v578 = vpow.pop %v577
      %v579 = vmul.f32 %v553, 1.442695
      %v580 = vpow.pop %v579
      %v581 = vmul.f32 %v554, 1.442695
      %v582 = vpow.pop %v581
      %v583 = vmul.f32 %v555, 1.442695
      %v584 = vpow.pop %v583
      %v585 = vmul.f32 %v556, 1.442695
      %v586 = vpow.pop %v585
      %v587 = vmul.f32 %v557, 1.442695
      %v588 = vpow.pop %v587
      %v589 = vmul.f32 %v558, 1.442695
      %v590 = vpow.pop %v589
      %v591 = vadd.f32 %v560, 1.0
      %v592 = vadd.f32 %v562, 1.0
      %v593 = vadd.f32 %v564, 1.0
      %v594 = vadd.f32 %v566, 1.0
      %v595 = vadd.f32 %v568, 1.0
      %v596 = vadd.f32 %v570, 1.0
      %v597 = vadd.f32 %v572, 1.0
      %v598 = vadd.f32 %v574, 1.0
      %v599 = vadd.f32 %v576, 1.0
      %v600 = vadd.f32 %v578, 1.0
      %v601 = vadd.f32 %v580, 1.0
      %v602 = vadd.f32 %v582, 1.0
      %v603 = vadd.f32 %v584, 1.0
      %v604 = vadd.f32 %v586, 1.0
      %v605 = vadd.f32 %v588, 1.0
      %v606 = vadd.f32 %v590, 1.0
      %v607 = vrcp.pop %v591
      %v608 = vmul.f32 1.0, %v607
      %v609 = vrcp.pop %v592
      %v610 = vmul.f32 1.0, %v609
      %v611 = vrcp.pop %v593
      %v612 = vmul.f32 1.0, %v611
      %v613 = vrcp.pop %v594
      %v614 = vmul.f32 1.0, %v613
      %v615 = vrcp.pop %v595
      %v616 = vmul.f32 1.0, %v615
      %v617 = vrcp.pop %v596
      %v618 = vmul.f32 1.0, %v617
      %v619 = vrcp.pop %v597
      %v620 = vmul.f32 1.0, %v619
      %v621 = vrcp.pop %v598
      %v622 = vmul.f32 1.0, %v621
      %v623 = vrcp.pop %v599
      %v624 = vmul.f32 1.0, %v623
      %v625 = vrcp.pop %v600
      %v626 = vmul.f32 1.0, %v625
      %v627 = vrcp.pop %v601
      %v628 = vmul.f32 1.0, %v627
      %v629 = vrcp.pop %v602
      %v630 = vmul.f32 1.0, %v629
      %v631 = vrcp.pop %v603
      %v632 = vmul.f32 1.0, %v631
      %v633 = vrcp.pop %v604
      %v634 = vmul.f32 1.0, %v633
      %v635 = vrcp.pop %v605
      %v636 = vmul.f32 1.0, %v635
      %v637 = vrcp.pop %v606
      %v638 = vmul.f32 1.0, %v637
      %v639 = vmul.f32 %v285, %v608
      %v640 = vmul.f32 %v286, %v610
      %v641 = vmul.f32 %v287, %v612
      %v642 = vmul.f32 %v288, %v614
      %v643 = vmul.f32 %v289, %v616
      %v644 = vmul.f32 %v290, %v618
      %v645 = vmul.f32 %v291, %v620
      %v646 = vmul.f32 %v292, %v622
      %v647 = vmul.f32 %v293, %v624
      %v648 = vmul.f32 %v294, %v626
      %v649 = vmul.f32 %v295, %v628
      %v650 = vmul.f32 %v296, %v630
      %v651 = vmul.f32 %v297, %v632
      %v652 = vmul.f32 %v298, %v634
      %v653 = vmul.f32 %v299, %v636
      %v654 = vmul.f32 %v300, %v638
      %v655 = vpack.c.bf16 %v641, %v639
      %v656 = vpack.c.bf16 %v642, %v640
      %v657 = vpack.c.bf16 %v645, %v643
      %v658 = vpack.c.bf16 %v646, %v644
      %v659 = vpack.c.bf16 %v649, %v647
      %v660 = vpack.c.bf16 %v650, %v648
      %v661 = vpack.c.bf16 %v653, %v651
      %v662 = vpack.c.bf16 %v654, %v652
      %v671 = vunpack.c.l.b16 %v655
      %v672 = vunpack.c.l.b16 %v656
      %v673 = vunpack.c.h.b16 %v655
      %v674 = vunpack.c.h.b16 %v656
      %v675 = vunpack.c.l.b16 %v657
      %v676 = vunpack.c.l.b16 %v658
      %v677 = vunpack.c.h.b16 %v657
      %v678 = vunpack.c.h.b16 %v658
      %v679 = vunpack.c.l.b16 %v659
      %v680 = vunpack.c.l.b16 %v660
      %v681 = vunpack.c.h.b16 %v659
      %v682 = vunpack.c.h.b16 %v660
      %v683 = vunpack.c.l.b16 %v661
      %v684 = vunpack.c.l.b16 %v662
      %v685 = vunpack.c.h.b16 %v661
      %v686 = vunpack.c.h.b16 %v662
      %v687 = vpack.c.b16 %v672, %v671
      %v688 = vpack.c.b16 %v674, %v673
      %v689 = vpack.c.b16 %v676, %v675
      %v690 = vpack.c.b16 %v678, %v677
      %v691 = vpack.c.b16 %v680, %v679
      %v692 = vpack.c.b16 %v682, %v681
      %v693 = vpack.c.b16 %v684, %v683
      %v694 = vpack.c.b16 %v686, %v685
      %703 = vst [vmem:[%s282] sm:$0xff] %v687
      %704 = vst [vmem:[%s282 + $0x8] sm:$0xff] %v688
      %705 = vst [vmem:[%s282 + $0x10] sm:$0xff] %v689
      %706 = vst [vmem:[%s282 + $0x18] sm:$0xff] %v690
      %707 = vst [vmem:[%s282 + $0x20] sm:$0xff] %v691
      %708 = vst [vmem:[%s282 + $0x28] sm:$0xff] %v692
      %709 = vst [vmem:[%s282 + $0x30] sm:$0xff] %v693
      %710 = vst [vmem:[%s282 + $0x38] sm:$0xff] %v694
      %s711 = smul.u32 2, %s21
      %p712 = scmp.lt.s32.totalorder %s20, 1
      %s713 = scalar_select %p712, %s20, 1
      %p714 = scmp.lt.s32.totalorder %s711, 1
      %s715 = scalar_select %p714, %s711, 1
      %s716 = smul.addr %s713, 16
      %s717 = sadd.s32 %s715, %s716
      %s718 = smul.addr %s717, 4
      %s719 = scalar_lea.vmem %s5, %s718
      // Predicated region
      $region41: #{ms_cam_pallas.1} parent=39 // pred_check
        %p720 = pneg %p165
      $region42: #{ms_cam_pallas.1} parent=39 // pred_check_branch
        %722 = sbr.rel (%p720) target = $region44
      $region43: #{ms_cam_pallas.1} parent=39 // pred_region
        %s723 = smul.u32 2, %s21
      $region44: #{ms_cam_pallas.1} parent=39 // pred_fallthru
        _
    $region40: #{ms_cam_pallas.1} parent=5 // pred_fallthru
      _
    %p724 = scmp.le.s32.totalorder 2, %s11
    // Predicated region
    $region45: #{ms_cam_pallas.1} parent=5 // pred_check
      %p725 = pneg %p724
    $region46: #{ms_cam_pallas.1} parent=5 // pred_check_branch
      %727 = sbr.rel (%p725) target = $region48
    $region47: #{ms_cam_pallas.1} parent=5 // pred_region
      %s728 = ssub.s32 %s11, 2
      // Predicated region
      $region49: #{ms_cam_pallas.1} parent=47 // pred_check
        %p729 = pneg %p171
      $region50: #{ms_cam_pallas.1} parent=47 // pred_check_branch
        %731 = sbr.rel (%p729) target = $region52
      $region51: #{ms_cam_pallas.1} parent=47 // pred_region
        %s732 = smul.u32 2, %s23
        %p733 = scmp.lt.s32.totalorder %s22, 1
        %s734 = scalar_select %p733, %s22, 1
        %p735 = scmp.lt.s32.totalorder %s732, 1
        %s736 = scalar_select %p735, %s732, 1
        %s737 = smul.addr %s734, 16
        %s738 = sadd.s32 %s736, %s737
        %s739 = smul.addr %s738, 4
        %s740 = scalar_lea.vmem %s5, %s739
      $region52: #{ms_cam_pallas.1} parent=47 // pred_fallthru
        _
    $region48: #{ms_cam_pallas.1} parent=5 // pred_fallthru
      _
  $region6: #{ms_cam_pallas.1} parent=0 // loop_footer
    %s15 = sadd.s32 1, %s11
  $region7: #{ms_cam_pallas.1} parent=0 // loop_footer_branch
    %10 = sbr.rel target = $region3
  $region8: #{ms_cam_pallas.1} parent=0 // loop_exit
    _

</llo_original>
